<compile_context>
chip_gen: v7x
topology: tpu7x:2x2x1
jax: 0.10.0
libtpu: 0.0.40
codegen_flags: <defaults>
</compile_context>

<pallas_src>
import functools

import jax
import jax.numpy as jnp
from jax import lax
from jax.experimental import pallas as pl
from jax.experimental.pallas import tpu as pltpu


def _round_up(x, m):
    return (x + m - 1) // m * m


def _layernorm_rows(x, gamma, beta, eps):
    """LayerNorm over the last axis of a (rows, H) f32 chunk (biased var, as torch)."""
    mu = jnp.mean(x, axis=-1, keepdims=True)
    cent = x - mu
    var = jnp.mean(cent * cent, axis=-1, keepdims=True)
    return cent * lax.rsqrt(var + eps) * gamma + beta


def _embed_onehot_ln_kernel(ids_ref, table_ref, gamma_ref, beta_ref, out_ref, *, rc, eps):
    """One grid step: gather a (TM, H) tile of embedding rows via a one-hot MXU
    matmul against the VMEM-resident table, then LayerNorm, sub-tiled RC rows at
    a time so the f32 working set stays in vregs. out_ref is written once per
    row range."""
    tm = out_ref.shape[0]
    vocab = table_ref.shape[0]
    table = table_ref[...]                               # (V, H), stays VMEM-resident
    gamma = gamma_ref[...].astype(jnp.float32)           # (1, H), loaded once per tile
    beta = beta_ref[...].astype(jnp.float32)             # (1, H)

    for c in range(tm // rc):                            # static sub-chunk loop
        ids_c = ids_ref[pl.ds(c * rc, rc), :]            # (rc, 1) int32
        eq = lax.broadcasted_iota(jnp.int32, (rc, vocab), 1) == ids_c
        one_hot = jnp.where(eq, 1.0, 0.0).astype(table.dtype)
        # Exact row selection: one matmul per sub-chunk, dense full-vreg MXU work.
        rows = jnp.dot(one_hot, table, preferred_element_type=jnp.float32)  # (rc, H)
        y = _layernorm_rows(rows, gamma, beta, eps)
        out_ref[pl.ds(c * rc, rc), :] = y.astype(out_ref.dtype)


def _ln_kernel(x_ref, gamma_ref, beta_ref, out_ref, *, rc, eps):
    """LayerNorm-only kernel (used when the embedding table stays in HBM and the
    row gather happens outside the kernel)."""
    tm = out_ref.shape[0]
    gamma = gamma_ref[...].astype(jnp.float32)
    beta = beta_ref[...].astype(jnp.float32)
    for c in range(tm // rc):
        x = x_ref[pl.ds(c * rc, rc), :].astype(jnp.float32)
        y = _layernorm_rows(x, gamma, beta, eps)
        out_ref[pl.ds(c * rc, rc), :] = y.astype(out_ref.dtype)


def embeddings_forward(input_ids, table, gamma, beta, *, eps=1e-5,
                       token_tile=512, out_dtype=jnp.float32,
                       force_hbm_gather=False):
    """input_ids: (B, S) int; table: (V, H); gamma, beta: (H,). Returns (B, S, H)."""
    B, S = input_ids.shape
    V, H = table.shape
    n_tok = B * S

    # Clamp ids: VMEM/HBM gathers have no runtime bounds check; an OOB id would
    # silently read garbage (or fault).
    ids = jnp.clip(input_ids.reshape(n_tok).astype(jnp.int32), 0, V - 1)

    # Token-tile sizing: TM multiple of 8 (dense sublane stores), RC-row sub-chunks
    # (<= 32 rows) keep the LN working set in vregs. Large TM amortizes the
    # ~600-cycle per-grid-step overhead.
    tm = max(8, min(int(token_tile), _round_up(n_tok, 8)))
    tm = _round_up(tm, 8)
    rc = tm if tm <= 32 else 32
    if tm % rc:
        tm = _round_up(tm, rc)
    n_pad = _round_up(n_tok, tm)
    n_tiles = n_pad // tm
    if n_pad != n_tok:
        # Pad with a valid id (0); padded rows are sliced off after the kernel.
        ids = jnp.concatenate([ids, jnp.zeros((n_pad - n_tok,), jnp.int32)])

    gamma2 = gamma.reshape(1, H).astype(jnp.float32)
    beta2 = beta.reshape(1, H).astype(jnp.float32)

    # Cap the requested VMEM at physical capacity (v7x: 64 MiB per TensorCore).
    try:
        phys_vmem = int(pltpu.get_tpu_info().vmem_capacity_bytes)
    except Exception:
        phys_vmem = 64 << 20
    headroom = 8 << 20

    itemsize = jnp.dtype(table.dtype).itemsize
    out_itemsize = jnp.dtype(out_dtype).itemsize
    resident_bytes = (
        V * H * itemsize                      # VMEM-resident embedding table
        + 2 * H * 4                           # gamma + beta
        + 2 * tm * 128 * 4                    # double-buffered (TM, 1) id tiles (lane-padded)
        + 2 * tm * H * out_itemsize           # double-buffered output tiles
        + rc * V * itemsize + 2 * rc * H * 4  # one-hot + gathered-rows temporaries
    )
    use_onehot = (not force_hbm_gather) and V <= 4096 and (
        resident_bytes + headroom <= phys_vmem)

    if use_onehot:
        # Small/moderate vocab: VMEM-resident table, one-hot MXU gather fused with LN.
        kernel = functools.partial(_embed_onehot_ln_kernel, rc=rc, eps=float(eps))
        vmem_limit = int(min(max(resident_bytes + headroom, 32 << 20), phys_vmem))
        out_flat = pl.pallas_call(
            kernel,
            out_shape=jax.ShapeDtypeStruct((n_pad, H), out_dtype),
            grid_spec=pltpu.PrefetchScalarGridSpec(
                num_scalar_prefetch=0,
                grid=(n_tiles,),
                in_specs=[
                    # Token ids: small blocked VMEM tiles (not a whole-array SMEM prefetch).
                    pl.BlockSpec((tm, 1), lambda t: (t, 0)),
                    # Table / gamma / beta fully VMEM-resident (fetched once, no per-step DMA).
                    pl.BlockSpec(memory_space=pltpu.MemorySpace.VMEM),
                    pl.BlockSpec(memory_space=pltpu.MemorySpace.VMEM),
                    pl.BlockSpec(memory_space=pltpu.MemorySpace.VMEM),
                ],
                out_specs=pl.BlockSpec((tm, H), lambda t: (t, 0)),
            ),
            compiler_params=pltpu.CompilerParams(
                # Distinct output block per step, no accumulator -> parallel.
                dimension_semantics=("parallel",),
                vmem_limit_bytes=vmem_limit,
            ),
        )(ids.reshape(n_pad, 1), table, gamma2, beta2)
    else:
        # Large-vocab path: table stays in HBM; gather moves only n_tok*H bytes and
        # the Pallas kernel fuses the LayerNorm over dense (TM, H) tiles.
        # TODO(synk): in-kernel HBM row-DMA gather (pl.ANY + make_async_copy,
        # double-buffered) to overlap row DMAs with LN compute.
        rows = jnp.take(table, ids, axis=0)
        kernel = functools.partial(_ln_kernel, rc=rc, eps=float(eps))
        vmem_limit = int(min(max(4 * tm * H * 4 + headroom, 32 << 20), phys_vmem))
        out_flat = pl.pallas_call(
            kernel,
            out_shape=jax.ShapeDtypeStruct((n_pad, H), out_dtype),
            grid_spec=pltpu.PrefetchScalarGridSpec(
                num_scalar_prefetch=0,
                grid=(n_tiles,),
                in_specs=[
                    pl.BlockSpec((tm, H), lambda t: (t, 0)),
                    pl.BlockSpec(memory_space=pltpu.MemorySpace.VMEM),
                    pl.BlockSpec(memory_space=pltpu.MemorySpace.VMEM),
                ],
                out_specs=pl.BlockSpec((tm, H), lambda t: (t, 0)),
            ),
            compiler_params=pltpu.CompilerParams(
                dimension_semantics=("parallel",),
                vmem_limit_bytes=vmem_limit,
            ),
        )(rows, gamma2, beta2)

    return out_flat[:n_tok].reshape(B, S, H)


def _init_params(key, vocab_size, hidden_size, pad_token_id):
    # Deterministic synthetic params (shapes follow the module's __init__).
    (k_tab,) = jax.random.split(key, 1)
    table = jax.random.normal(k_tab, (vocab_size, hidden_size), dtype=jnp.float32) * 0.02
    # padding_idx row is zero-initialized in nn.Embedding
    table = table.at[pad_token_id].set(0.0)
    gamma = jnp.ones((hidden_size,), dtype=jnp.float32)
    beta = jnp.zeros((hidden_size,), dtype=jnp.float32)
    return table, gamma, beta


def _reference(input_ids, table, gamma, beta, eps):
    emb = jnp.take(table, input_ids, axis=0)
    mu = jnp.mean(emb, axis=-1, keepdims=True)
    var = jnp.mean((emb - mu) ** 2, axis=-1, keepdims=True)
    return (emb - mu) / jnp.sqrt(var + eps) * gamma + beta


if __name__ == "__main__":
    # Small, forward-consistent shapes (hidden last, multiple of 128).
    B, S = 2, 9
    VOCAB = 512
    HIDDEN = 128
    PAD_ID = VOCAB - 1
    EPS = 1e-5

    key = jax.random.PRNGKey(0)
    k_params, k_ids = jax.random.split(key)

    table, gamma, beta = _init_params(k_params, VOCAB, HIDDEN, PAD_ID)
    input_ids = jax.random.randint(k_ids, (B, S), 0, VOCAB, dtype=jnp.int32)
    # Make sure the pad token appears at least once (exercises padding_idx row).
    input_ids = input_ids.at[0, 0].set(PAD_ID)

    ref = _reference(input_ids, table, gamma, beta, EPS)

    # 1) Default one-hot MXU gather path (single token tile covering all tokens).
    out = embeddings_forward(input_ids, table, gamma, beta, eps=EPS)
    jax.block_until_ready(out)
    assert out.shape == (B, S, HIDDEN)
    assert jnp.allclose(out, ref, atol=1e-3, rtol=1e-3), "one-hot path mismatch"

    # 2) Multi-tile path (token_tile=8 -> several grid steps + tail padding).
    out_multi = embeddings_forward(input_ids, table, gamma, beta, eps=EPS, token_tile=8)
    jax.block_until_ready(out_multi)
    assert out_multi.shape == (B, S, HIDDEN)
    assert jnp.allclose(out_multi, ref, atol=1e-3, rtol=1e-3), "multi-tile path mismatch"

    # 3) Large-vocab fallback path (HBM table, LayerNorm-only Pallas kernel).
    out_hbm = embeddings_forward(input_ids, table, gamma, beta, eps=EPS,
                                 force_hbm_gather=True)
    jax.block_until_ready(out_hbm)
    assert out_hbm.shape == (B, S, HIDDEN)
    assert jnp.allclose(out_hbm, ref, atol=1e-3, rtol=1e-3), "hbm-gather path mismatch"

    print("KERNEL_OK")
</pallas_src>

<mosaic_0001>
module attributes {stable_mosaic.version = 11 : i64} {
  func.func @_embed_onehot_ln_kernel(%arg0: i32, %arg1: memref<24x1xi32, #tpu.memory_space<vmem>>, %arg2: memref<512x128xf32, #tpu.memory_space<vmem>>, %arg3: memref<1x128xf32, #tpu.memory_space<vmem>>, %arg4: memref<1x128xf32, #tpu.memory_space<vmem>>, %arg5: memref<24x128xf32, #tpu.memory_space<vmem>>) attributes {dimension_semantics = [#tpu.dimension_semantics<parallel>], iteration_bounds = array<i64: 1>, scalar_prefetch = 0 : i64, scratch_operands = 0 : i64, tpu.core_type = #tpu.core_type<tc>, window_params = [{transform_indices = @transform_0, window_bounds = array<i64: 24, 1>}, {pipeline_mode = #tpu.pipeline_mode<synchronous>, transform_indices = @transform_1, window_bounds = array<i64: 512, 128>}, {pipeline_mode = #tpu.pipeline_mode<synchronous>, transform_indices = @transform_2, window_bounds = array<i64: 1, 128>}, {pipeline_mode = #tpu.pipeline_mode<synchronous>, transform_indices = @transform_3, window_bounds = array<i64: 1, 128>}, {transform_indices = @transform_4, window_bounds = array<i64: 24, 128>}]} {
    %c0 = arith.constant 0 : index
    %c0_0 = arith.constant 0 : index
    %0 = vector.load %arg2[%c0, %c0_0] : memref<512x128xf32, #tpu.memory_space<vmem>>, vector<512x128xf32>
    %c0_1 = arith.constant 0 : index
    %c0_2 = arith.constant 0 : index
    %1 = vector.load %arg3[%c0_1, %c0_2] : memref<1x128xf32, #tpu.memory_space<vmem>>, vector<1x128xf32>
    %c0_3 = arith.constant 0 : index
    %c0_4 = arith.constant 0 : index
    %2 = vector.load %arg4[%c0_3, %c0_4] : memref<1x128xf32, #tpu.memory_space<vmem>>, vector<1x128xf32>
    %c0_5 = arith.constant 0 : index
    %c0_6 = arith.constant 0 : index
    %3 = vector.load %arg1[%c0_5, %c0_6] : memref<24x1xi32, #tpu.memory_space<vmem>>, vector<24x1xi32>
    %4 = tpu.iota {dimensions = array<i32: 1>} : vector<24x512xi32>
    %5 = vector.broadcast %3 : vector<24x1xi32> to vector<24x512xi32>
    %6 = arith.cmpi eq, %4, %5 : vector<24x512xi32>
    %cst = arith.constant 1.000000e+00 : f32
    %cst_7 = arith.constant 0.000000e+00 : f32
    %7 = vector.broadcast %cst : f32 to vector<24x512xf32>
    %8 = vector.broadcast %cst_7 : f32 to vector<24x512xf32>
    %9 = arith.select %6, %7, %8 : vector<24x512xi1>, vector<24x512xf32>
    %cst_8 = arith.constant dense<0.000000e+00> : vector<24x128xf32>
    %10 = tpu.matmul %9, %0, %cst_8 {dimension_numbers = #tpu.dot_dimension_numbers<[1], [0], [0], [1], [0, 0, 1, 1], [], []>} : vector<24x512xf32>, vector<512x128xf32>, vector<24x128xf32> -> vector<24x128xf32>
    %cst_9 = arith.constant dense<0.000000e+00> : vector<24xf32>
    %11 = vector.multi_reduction <add>, %10, %cst_9 [1] : vector<24x128xf32> to vector<24xf32>
    %12 = vector.shape_cast %11 : vector<24xf32> to vector<24x1xf32>
    %cst_10 = arith.constant 1.280000e+02 : f32
    %13 = vector.broadcast %cst_10 : f32 to vector<24x1xf32>
    %14 = arith.divf %12, %13 : vector<24x1xf32>
    %15 = vector.broadcast %14 : vector<24x1xf32> to vector<24x128xf32>
    %16 = arith.subf %10, %15 : vector<24x128xf32>
    %17 = arith.mulf %16, %16 : vector<24x128xf32>
    %cst_11 = arith.constant dense<0.000000e+00> : vector<24xf32>
    %18 = vector.multi_reduction <add>, %17, %cst_11 [1] : vector<24x128xf32> to vector<24xf32>
    %19 = vector.shape_cast %18 : vector<24xf32> to vector<24x1xf32>
    %cst_12 = arith.constant 1.280000e+02 : f32
    %20 = vector.broadcast %cst_12 : f32 to vector<24x1xf32>
    %21 = arith.divf %19, %20 : vector<24x1xf32>
    %cst_13 = arith.constant 9.99999974E-6 : f32
    %22 = vector.broadcast %cst_13 : f32 to vector<24x1xf32>
    %23 = arith.addf %21, %22 : vector<24x1xf32>
    %24 = math.rsqrt %23 : vector<24x1xf32>
    %25 = vector.broadcast %24 : vector<24x1xf32> to vector<24x128xf32>
    %26 = arith.mulf %16, %25 : vector<24x128xf32>
    %27 = vector.broadcast %1 : vector<1x128xf32> to vector<24x128xf32>
    %28 = arith.mulf %26, %27 : vector<24x128xf32>
    %29 = vector.broadcast %2 : vector<1x128xf32> to vector<24x128xf32>
    %30 = arith.addf %28, %29 : vector<24x128xf32>
    %c0_14 = arith.constant 0 : index
    %c0_15 = arith.constant 0 : index
    %31 = vector.load %arg5[%c0_14, %c0_15] : memref<24x128xf32, #tpu.memory_space<vmem>>, vector<24x128xf32>
    tpu.vector_store %arg5[%c0_14, %c0_15], %30 {strides = array<i32>} : memref<24x128xf32, #tpu.memory_space<vmem>>, vector<24x128xf32>,
    return
  }
  func.func @transform_0(%arg0: i32) -> (i32, i32) {
    %c0_i32 = arith.constant 0 : i32
    %c0_i32_0 = arith.constant 0 : i32
    return %arg0, %c0_i32 : i32, i32
  }
  func.func @transform_1(%arg0: i32) -> (i32, i32) {
    %c0_i32 = arith.constant 0 : i32
    %c0_i32_0 = arith.constant 0 : i32
    %c0_i32_1 = arith.constant 0 : i32
    return %c0_i32, %c0_i32_0 : i32, i32
  }
  func.func @transform_2(%arg0: i32) -> (i32, i32) {
    %c0_i32 = arith.constant 0 : i32
    %c0_i32_0 = arith.constant 0 : i32
    %c0_i32_1 = arith.constant 0 : i32
    return %c0_i32, %c0_i32_0 : i32, i32
  }
  func.func @transform_3(%arg0: i32) -> (i32, i32) {
    %c0_i32 = arith.constant 0 : i32
    %c0_i32_0 = arith.constant 0 : i32
    %c0_i32_1 = arith.constant 0 : i32
    return %c0_i32, %c0_i32_0 : i32, i32
  }
  func.func @transform_4(%arg0: i32) -> (i32, i32) {
    %c0_i32 = arith.constant 0 : i32
    %c0_i32_0 = arith.constant 0 : i32
    return %arg0, %c0_i32 : i32, i32
  }
}

</mosaic_0001>

<llo_original>
// kernel: tpu_custom_call.1
$region0: #{tpu_custom_call.1}
  #allocation0 [shape = 'u32[]', space=smem, size = 0x4, offset = 0x4, fixed_abs, tag = 'smem constant byte address 0x4 - core index']
  #allocation1 [shape = 'u32[144,128]{1,0:T(1,128)}', space=vmem, size = 0x12000, scoped, tag = 'internal scratch']
  %s0 = inlined_call_operand.vmem [shape: s32[24,1], index: 0, kind: input, shape index: {}]
  %s1 = inlined_call_operand.hbm [shape: f32[512,128], index: 1, kind: input, shape index: {}]
  %s2 = inlined_call_operand.vmem [shape: f32[1,128], index: 2, kind: input, shape index: {}]
  %s3 = inlined_call_operand.vmem [shape: f32[1,128], index: 3, kind: input, shape index: {}]
  %s4 = inlined_call_operand.hbm [shape: f32[24,128], index: 4, kind: output, shape index: {}]
  %s5 = sld [smem:[#allocation0]]
  $region30: #{tpu_custom_call.1} parent=0
    _
  %s7 = ssub.s32 1, %s5
  %s8 = scalar_select 0, %s7, %s5
  $region1: #{tpu_custom_call.1} parent=0
    #allocation2 [shape = 'u8[262144]{0}', space=vmem, size = 0x40000, scoped, tag = 'input window, operand 1, single buffered']
    #allocation3 [shape = 's32[1]{0}', space=sflag, size = 0x4, scoped, tag = 'scoped memory for tpu_custom_call.1']
    #allocation4 [shape = 's32[1]{0}', space=sflag, size = 0x4, scoped, tag = 'scoped memory for tpu_custom_call.1']
    #allocation5 [shape = 'u8[12288]{0}', space=vmem, size = 0x3000, scoped, tag = 'output window, operand 0, single buffered']
    %9 = vsyncpa [#allocation3], 0
    %10 = vsyncpa [#allocation4], 0
    // Predicated region
    $region2: #{tpu_custom_call.1} parent=1 // pred_check
      _
    $region3: #{tpu_custom_call.1} parent=1 // pred_check_branch
      %12 = sbr.rel (0) target = $region5
    $region4: #{tpu_custom_call.1} parent=1 // pred_region
      _
    $region5: #{tpu_custom_call.1} parent=1 // pred_fallthru
      _
    // Predicated region
    $region6: #{tpu_custom_call.1} parent=1 // pred_check
      _
    $region7: #{tpu_custom_call.1} parent=1 // pred_check_branch
      %14 = sbr.rel (0) target = $region9
    $region8: #{tpu_custom_call.1} parent=1 // pred_region
      %s16 = ssub.s32 8192, 8192
      %17 = vsyncadd [#allocation3], %s16
      %s18 = sshll.u32 [#allocation2], 4
      %s19 = int_to_ptr.vmem [resolvable:$true] %s18
      %24 = dma.hbm_to_vmem [thread:$0]  %s1, 8192, %s19, [#allocation3], 128, 128, 8
    $region9: #{tpu_custom_call.1} parent=1 // pred_fallthru
      _
    // Predicated region
    $region10: #{tpu_custom_call.1} parent=1 // pred_check
      _
    $region11: #{tpu_custom_call.1} parent=1 // pred_check_branch
      %26 = sbr.rel (0) target = $region13
    $region12: #{tpu_custom_call.1} parent=1 // pred_region
      _
    $region13: #{tpu_custom_call.1} parent=1 // pred_fallthru
      _
    // Predicated region
    $region14: #{tpu_custom_call.1} parent=1 // pred_check
      _
    $region15: #{tpu_custom_call.1} parent=1 // pred_check_branch
      %28 = sbr.rel (0) target = $region17
    $region16: #{tpu_custom_call.1} parent=1 // pred_region
      _
    $region17: #{tpu_custom_call.1} parent=1 // pred_fallthru
      _
    // Predicated region
    $region18: #{tpu_custom_call.1} parent=1 // pred_check
      _
    $region19: #{tpu_custom_call.1} parent=1 // pred_check_branch
      %30 = sbr.rel (0) target = $region21
    $region20: #{tpu_custom_call.1} parent=1 // pred_region
      %31 = dma.done [#allocation3], 8192
    $region21: #{tpu_custom_call.1} parent=1 // pred_fallthru
      _
    %v32 = vld [vmem:[#allocation2] sm:$0xff]
    %v33 = vld [vmem:[#allocation2 + $0x8] sm:$0xff]
    %v34 = vld [vmem:[#allocation2 + $0x10] sm:$0xff]
    %v35 = vld [vmem:[#allocation2 + $0x18] sm:$0xff]
    %v36 = vld [vmem:[#allocation2 + $0x20] sm:$0xff]
    %v37 = vld [vmem:[#allocation2 + $0x28] sm:$0xff]
    %v38 = vld [vmem:[#allocation2 + $0x30] sm:$0xff]
    %v39 = vld [vmem:[#allocation2 + $0x38] sm:$0xff]
    %v40 = vld [vmem:[#allocation2 + $0x40] sm:$0xff]
    %v41 = vld [vmem:[#allocation2 + $0x48] sm:$0xff]
    %v42 = vld [vmem:[#allocation2 + $0x50] sm:$0xff]
    %v43 = vld [vmem:[#allocation2 + $0x58] sm:$0xff]
    %v44 = vld [vmem:[#allocation2 + $0x60] sm:$0xff]
    %v45 = vld [vmem:[#allocation2 + $0x68] sm:$0xff]
    %v46 = vld [vmem:[#allocation2 + $0x70] sm:$0xff]
    %v47 = vld [vmem:[#allocation2 + $0x78] sm:$0xff]
    %v48 = vld [vmem:[#allocation2 + $0x80] sm:$0xff]
    %v49 = vld [vmem:[#allocation2 + $0x88] sm:$0xff]
    %v50 = vld [vmem:[#allocation2 + $0x90] sm:$0xff]
    %v51 = vld [vmem:[#allocation2 + $0x98] sm:$0xff]
    %v52 = vld [vmem:[#allocation2 + $0xa0] sm:$0xff]
    %v53 = vld [vmem:[#allocation2 + $0xa8] sm:$0xff]
    %v54 = vld [vmem:[#allocation2 + $0xb0] sm:$0xff]
    %v55 = vld [vmem:[#allocation2 + $0xb8] sm:$0xff]
    %v56 = vld [vmem:[#allocation2 + $0xc0] sm:$0xff]
    %v57 = vld [vmem:[#allocation2 + $0xc8] sm:$0xff]
    %v58 = vld [vmem:[#allocation2 + $0xd0] sm:$0xff]
    %v59 = vld [vmem:[#allocation2 + $0xd8] sm:$0xff]
    %v60 = vld [vmem:[#allocation2 + $0xe0] sm:$0xff]
    %v61 = vld [vmem:[#allocation2 + $0xe8] sm:$0xff]
    %v62 = vld [vmem:[#allocation2 + $0xf0] sm:$0xff]
    %v63 = vld [vmem:[#allocation2 + $0xf8] sm:$0xff]
    %v64 = vld [vmem:[#allocation2 + $0x100] sm:$0xff]
    %v65 = vld [vmem:[#allocation2 + $0x108] sm:$0xff]
    %v66 = vld [vmem:[#allocation2 + $0x110] sm:$0xff]
    %v67 = vld [vmem:[#allocation2 + $0x118] sm:$0xff]
    %v68 = vld [vmem:[#allocation2 + $0x120] sm:$0xff]
    %v69 = vld [vmem:[#allocation2 + $0x128] sm:$0xff]
    %v70 = vld [vmem:[#allocation2 + $0x130] sm:$0xff]
    %v71 = vld [vmem:[#allocation2 + $0x138] sm:$0xff]
    %v72 = vld [vmem:[#allocation2 + $0x140] sm:$0xff]
    %v73 = vld [vmem:[#allocation2 + $0x148] sm:$0xff]
    %v74 = vld [vmem:[#allocation2 + $0x150] sm:$0xff]
    %v75 = vld [vmem:[#allocation2 + $0x158] sm:$0xff]
    %v76 = vld [vmem:[#allocation2 + $0x160] sm:$0xff]
    %v77 = vld [vmem:[#allocation2 + $0x168] sm:$0xff]
    %v78 = vld [vmem:[#allocation2 + $0x170] sm:$0xff]
    %v79 = vld [vmem:[#allocation2 + $0x178] sm:$0xff]
    %v80 = vld [vmem:[#allocation2 + $0x180] sm:$0xff]
    %v81 = vld [vmem:[#allocation2 + $0x188] sm:$0xff]
    %v82 = vld [vmem:[#allocation2 + $0x190] sm:$0xff]
    %v83 = vld [vmem:[#allocation2 + $0x198] sm:$0xff]
    %v84 = vld [vmem:[#allocation2 + $0x1a0] sm:$0xff]
    %v85 = vld [vmem:[#allocation2 + $0x1a8] sm:$0xff]
    %v86 = vld [vmem:[#allocation2 + $0x1b0] sm:$0xff]
    %v87 = vld [vmem:[#allocation2 + $0x1b8] sm:$0xff]
    %v88 = vld [vmem:[#allocation2 + $0x1c0] sm:$0xff]
    %v89 = vld [vmem:[#allocation2 + $0x1c8] sm:$0xff]
    %v90 = vld [vmem:[#allocation2 + $0x1d0] sm:$0xff]
    %v91 = vld [vmem:[#allocation2 + $0x1d8] sm:$0xff]
    %v92 = vld [vmem:[#allocation2 + $0x1e0] sm:$0xff]
    %v93 = vld [vmem:[#allocation2 + $0x1e8] sm:$0xff]
    %v94 = vld [vmem:[#allocation2 + $0x1f0] sm:$0xff]
    %v95 = vld [vmem:[#allocation2 + $0x1f8] sm:$0xff]
    %v96 = vld [vmem:[%s2] sm:$0x1]
    %v97 = vld [vmem:[%s3] sm:$0x1]
    %v98 = vld [vmem:[%s0] sm:$0xff]
    %v99 = vld [vmem:[%s0 + $0x8] sm:$0xff]
    %v100 = vld [vmem:[%s0 + $0x10] sm:$0xff]
    %v101 = vlaneseq
    %v102 = vand.u32 %v101, 127
    %v103 = vadd.s32 %v102, 128
    %v104 = vadd.s32 %v102, 256
    %v105 = vadd.s32 %v102, 384
    %106 = vset.pattern.permute.xlu0 0
    %107 = vperm.xlu0 %106, %v98
    %v108 = vpop.permute.xlu0 %107
    %109 = vset.pattern.permute.xlu0 0
    %110 = vperm.xlu0 %109, %v99
    %v111 = vpop.permute.xlu0 %110
    %112 = vset.pattern.permute.xlu0 0
    %113 = vperm.xlu0 %112, %v100
    %v114 = vpop.permute.xlu0 %113
    %vm115 = vcmp.eq.s32.totalorder %v102, %v108
    %vm116 = vcmp.eq.s32.totalorder %v103, %v108
    %vm117 = vcmp.eq.s32.totalorder %v104, %v108
    %vm118 = vcmp.eq.s32.totalorder %v105, %v108
    %vm119 = vcmp.eq.s32.totalorder %v102, %v111
    %vm120 = vcmp.eq.s32.totalorder %v103, %v111
    %vm121 = vcmp.eq.s32.totalorder %v104, %v111
    %vm122 = vcmp.eq.s32.totalorder %v105, %v111
    %vm123 = vcmp.eq.s32.totalorder %v102, %v114
    %vm124 = vcmp.eq.s32.totalorder %v103, %v114
    %vm125 = vcmp.eq.s32.totalorder %v104, %v114
    %vm126 = vcmp.eq.s32.totalorder %v105, %v114
    %v127 = vsel %vm115, 1.0, 0.0
    %v128 = vsel %vm116, 1.0, 0.0
    %v129 = vsel %vm117, 1.0, 0.0
    %v130 = vsel %vm118, 1.0, 0.0
    %v131 = vsel %vm119, 1.0, 0.0
    %v132 = vsel %vm120, 1.0, 0.0
    %v133 = vsel %vm121, 1.0, 0.0
    %v134 = vsel %vm122, 1.0, 0.0
    %v135 = vsel %vm123, 1.0, 0.0
    %v136 = vsel %vm124, 1.0, 0.0
    %v137 = vsel %vm125, 1.0, 0.0
    %v138 = vsel %vm126, 1.0, 0.0
    %139 = vmatprep.subr.mxu0 0.0
    %140 = vmatpush1.msra.mxu0 %v32
    %141 = vmatprep.subr.mxu0 0.0
    %142 = vmatpush1.msra.mxu0 %v33
    %143 = vmatprep.subr.mxu0 0.0
    %144 = vmatpush1.msra.mxu0 %v34
    %145 = vmatprep.subr.mxu0 0.0
    %146 = vmatpush1.msra.mxu0 %v35
    %147 = vmatprep.subr.mxu0 0.0
    %148 = vmatpush1.msra.mxu0 %v36
    %149 = vmatprep.subr.mxu0 0.0
    %150 = vmatpush1.msra.mxu0 %v37
    %151 = vmatprep.subr.mxu0 0.0
    %152 = vmatpush1.msra.mxu0 %v38
    %153 = vmatprep.subr.mxu0 0.0
    %154 = vmatpush1.msra.mxu0 %v39
    %155 = vmatprep.subr.mxu0 0.0
    %156 = vmatpush1.msra.mxu0 %v40
    %157 = vmatprep.subr.mxu0 0.0
    %158 = vmatpush1.msra.mxu0 %v41
    %159 = vmatprep.subr.mxu0 0.0
    %160 = vmatpush1.msra.mxu0 %v42
    %161 = vmatprep.subr.mxu0 0.0
    %162 = vmatpush1.msra.mxu0 %v43
    %163 = vmatprep.subr.mxu0 0.0
    %164 = vmatpush1.msra.mxu0 %v44
    %165 = vmatprep.subr.mxu0 0.0
    %166 = vmatpush1.msra.mxu0 %v45
    %167 = vmatprep.subr.mxu0 0.0
    %168 = vmatpush1.msra.mxu0 %v46
    %169 = vmatprep.subr.mxu0 0.0
    %170 = vmatpush1.msra.mxu0 %v47
    %171 = vmatprep.subr.mxu0 0.0
    %172 = vmatpush1.msra.mxu0 %v48
    %173 = vmatprep.subr.mxu0 0.0
    %174 = vmatpush1.msra.mxu0 %v49
    %175 = vmatprep.subr.mxu0 0.0
    %176 = vmatpush1.msra.mxu0 %v50
    %177 = vmatprep.subr.mxu0 0.0
    %178 = vmatpush1.msra.mxu0 %v51
    %179 = vmatprep.subr.mxu0 0.0
    %180 = vmatpush1.msra.mxu0 %v52
    %181 = vmatprep.subr.mxu0 0.0
    %182 = vmatpush1.msra.mxu0 %v53
    %183 = vmatprep.subr.mxu0 0.0
    %184 = vmatpush1.msra.mxu0 %v54
    %185 = vmatprep.subr.mxu0 0.0
    %186 = vmatpush1.msra.mxu0 %v55
    %187 = vmatprep.subr.mxu0 0.0
    %188 = vmatpush1.msra.mxu0 %v56
    %189 = vmatprep.subr.mxu0 0.0
    %190 = vmatpush1.msra.mxu0 %v57
    %191 = vmatprep.subr.mxu0 0.0
    %192 = vmatpush1.msra.mxu0 %v58
    %193 = vmatprep.subr.mxu0 0.0
    %194 = vmatpush1.msra.mxu0 %v59
    %195 = vmatprep.subr.mxu0 0.0
    %196 = vmatpush1.msra.mxu0 %v60
    %197 = vmatprep.subr.mxu0 0.0
    %198 = vmatpush1.msra.mxu0 %v61
    %199 = vmatprep.subr.mxu0 0.0
    %200 = vmatpush1.msra.mxu0 %v62
    %201 = vmatprep.subr.mxu0 0.0
    %202 = vmatpush1.msra.mxu0 %v63
    %203 = vmatprep.mubr.f32.mxu0 %v128
    %204 = vmatmul.mubr.f32.gmra.mrb[0].mxu0 %v127
    %v205 = vpop.f32.mrb[0].mxu0
    %v206 = vadd.f32 0.0, %v205
    %v207 = vpop.f32.mrb[0].mxu0
    %208 = vmatprep.mubr.f32.mxu0 %v132
    %209 = vmatmul.mubr.f32.gmra.mrb[0].mxu0 %v131
    %v210 = vpop.f32.mrb[0].mxu0
    %v211 = vadd.f32 0.0, %v210
    %v212 = vpop.f32.mrb[0].mxu0
    %213 = vmatprep.mubr.f32.mxu0 %v136
    %214 = vmatmul.mubr.f32.gmra.mrb[0].mxu0 %v135
    %v215 = vpop.f32.mrb[0].mxu0
    %v216 = vadd.f32 0.0, %v215
    %v217 = vpop.f32.mrb[0].mxu0
    %218 = vdwg.mxu0
    %219 = vmatprep.subr.mxu0 0.0
    %220 = vmatpush1.msra.mxu0 %v64
    %221 = vmatprep.subr.mxu0 0.0
    %222 = vmatpush1.msra.mxu0 %v65
    %223 = vmatprep.subr.mxu0 0.0
    %224 = vmatpush1.msra.mxu0 %v66
    %225 = vmatprep.subr.mxu0 0.0
    %226 = vmatpush1.msra.mxu0 %v67
    %227 = vmatprep.subr.mxu0 0.0
    %228 = vmatpush1.msra.mxu0 %v68
    %229 = vmatprep.subr.mxu0 0.0
    %230 = vmatpush1.msra.mxu0 %v69
    %231 = vmatprep.subr.mxu0 0.0
    %232 = vmatpush1.msra.mxu0 %v70
    %233 = vmatprep.subr.mxu0 0.0
    %234 = vmatpush1.msra.mxu0 %v71
    %235 = vmatprep.subr.mxu0 0.0
    %236 = vmatpush1.msra.mxu0 %v72
    %237 = vmatprep.subr.mxu0 0.0
    %238 = vmatpush1.msra.mxu0 %v73
    %239 = vmatprep.subr.mxu0 0.0
    %240 = vmatpush1.msra.mxu0 %v74
    %241 = vmatprep.subr.mxu0 0.0
    %242 = vmatpush1.msra.mxu0 %v75
    %243 = vmatprep.subr.mxu0 0.0
    %244 = vmatpush1.msra.mxu0 %v76
    %245 = vmatprep.subr.mxu0 0.0
    %246 = vmatpush1.msra.mxu0 %v77
    %247 = vmatprep.subr.mxu0 0.0
    %248 = vmatpush1.msra.mxu0 %v78
    %249 = vmatprep.subr.mxu0 0.0
    %250 = vmatpush1.msra.mxu0 %v79
    %251 = vmatprep.subr.mxu0 0.0
    %252 = vmatpush1.msra.mxu0 %v80
    %253 = vmatprep.subr.mxu0 0.0
    %254 = vmatpush1.msra.mxu0 %v81
    %255 = vmatprep.subr.mxu0 0.0
    %256 = vmatpush1.msra.mxu0 %v82
    %257 = vmatprep.subr.mxu0 0.0
    %258 = vmatpush1.msra.mxu0 %v83
    %259 = vmatprep.subr.mxu0 0.0
    %260 = vmatpush1.msra.mxu0 %v84
    %261 = vmatprep.subr.mxu0 0.0
    %262 = vmatpush1.msra.mxu0 %v85
    %263 = vmatprep.subr.mxu0 0.0
    %264 = vmatpush1.msra.mxu0 %v86
    %265 = vmatprep.subr.mxu0 0.0
    %266 = vmatpush1.msra.mxu0 %v87
    %267 = vmatprep.subr.mxu0 0.0
    %268 = vmatpush1.msra.mxu0 %v88
    %269 = vmatprep.subr.mxu0 0.0
    %270 = vmatpush1.msra.mxu0 %v89
    %271 = vmatprep.subr.mxu0 0.0
    %272 = vmatpush1.msra.mxu0 %v90
    %273 = vmatprep.subr.mxu0 0.0
    %274 = vmatpush1.msra.mxu0 %v91
    %275 = vmatprep.subr.mxu0 0.0
    %276 = vmatpush1.msra.mxu0 %v92
    %277 = vmatprep.subr.mxu0 0.0
    %278 = vmatpush1.msra.mxu0 %v93
    %279 = vmatprep.subr.mxu0 0.0
    %280 = vmatpush1.msra.mxu0 %v94
    %281 = vmatprep.subr.mxu0 0.0
    %282 = vmatpush1.msra.mxu0 %v95
    %283 = vmatprep.mubr.f32.mxu0 %v130
    %284 = vmatmul.mubr.f32.gmra.mrb[0].mxu0 %v129
    %v285 = vpop.f32.mrb[0].mxu0
    %v286 = vadd.f32 %v206, %v285
    %v287 = vpop.f32.mrb[0].mxu0
    %288 = vmatprep.mubr.f32.mxu0 %v134
    %289 = vmatmul.mubr.f32.gmra.mrb[0].mxu0 %v133
    %v290 = vpop.f32.mrb[0].mxu0
    %v291 = vadd.f32 %v211, %v290
    %v292 = vpop.f32.mrb[0].mxu0
    %293 = vmatprep.mubr.f32.mxu0 %v138
    %294 = vmatmul.mubr.f32.gmra.mrb[0].mxu0 %v137
    %v295 = vpop.f32.mrb[0].mxu0
    %v296 = vadd.f32 %v216, %v295
    %v297 = vpop.f32.mrb[0].mxu0
    %298 = vdwg.mxu0
    %299 = vadd.xlane.f32.xlu0 %v286
    %v300 = vpop.xlane.xlu0 %299
    %301 = vadd.xlane.f32.xlu0 %v291
    %v302 = vpop.xlane.xlu0 %301
    %303 = vadd.xlane.f32.xlu0 %v296
    %v304 = vpop.xlane.xlu0 %303
    %v305 = vrcp.pop 128.0
    %v306 = vmul.f32 %v300, %v305
    %v307 = vmul.f32 %v302, %v305
    %v308 = vmul.f32 %v304, %v305
    %v309 = vsub.f32 %v286, %v306
    %v310 = vsub.f32 %v291, %v307
    %v311 = vsub.f32 %v296, %v308
    %v312 = vmul.f32 %v309, %v309
    %v313 = vmul.f32 %v310, %v310
    %v314 = vmul.f32 %v311, %v311
    %315 = vadd.xlane.f32.xlu0 %v312
    %v316 = vpop.xlane.xlu0 %315
    %317 = vadd.xlane.f32.xlu0 %v313
    %v318 = vpop.xlane.xlu0 %317
    %319 = vadd.xlane.f32.xlu0 %v314
    %v320 = vpop.xlane.xlu0 %319
    %v321 = vmul.f32 %v316, %v305
    %v322 = vmul.f32 %v318, %v305
    %v323 = vmul.f32 %v320, %v305
    %v324 = vadd.f32 %v321, 1e-05
    %v325 = vadd.f32 %v322, 1e-05
    %v326 = vadd.f32 %v323, 1e-05
    %v327 = vrsqrt.pop %v324
    %v328 = vrsqrt.pop %v325
    %v329 = vrsqrt.pop %v326
    %v330 = vmul.f32 %v309, %v327
    %v331 = vmul.f32 %v310, %v328
    %v332 = vmul.f32 %v311, %v329
    %v334 = vlaneseq
    %v335 = vshrl.u32 %v334, 7
    %v336 = vsub.s32 0, %v335
    %v337 = vrot.slane %v96, %v336
    %v339 = vmul.f32 %v330, %v337
    %v340 = vmul.f32 %v331, %v337
    %v341 = vmul.f32 %v332, %v337
    %v343 = vlaneseq
    %v344 = vshrl.u32 %v343, 7
    %v345 = vsub.s32 0, %v344
    %v346 = vrot.slane %v97, %v345
    %v348 = vadd.f32 %v339, %v346
    %v349 = vadd.f32 %v340, %v346
    %v350 = vadd.f32 %v341, %v346
    %351 = vst [vmem:[#allocation5] sm:$0xff] %v348
    %352 = vst [vmem:[#allocation5 + $0x8] sm:$0xff] %v349
    %353 = vst [vmem:[#allocation5 + $0x10] sm:$0xff] %v350
    // Predicated region
    $region22: #{tpu_custom_call.1} parent=1 // pred_check
      _
    $region23: #{tpu_custom_call.1} parent=1 // pred_check_branch
      %355 = sbr.rel (0) target = $region25
    $region24: #{tpu_custom_call.1} parent=1 // pred_region
      %s357 = ssub.s32 384, 384
      %358 = vsyncadd [#allocation4], %s357
      %s359 = sshll.u32 [#allocation5], 4
      %s360 = int_to_ptr.vmem [resolvable:$true] %s359
      %365 = dma.vmem_to_hbm [thread:$0]  %s360, 384, %s4, [#allocation4], 128, 128, 8
    $region25: #{tpu_custom_call.1} parent=1 // pred_fallthru
      _
    // Predicated region
    $region26: #{tpu_custom_call.1} parent=1 // pred_check
      _
    $region27: #{tpu_custom_call.1} parent=1 // pred_check_branch
      %367 = sbr.rel (0) target = $region29
    $region28: #{tpu_custom_call.1} parent=1 // pred_region
      %368 = dma.done [#allocation4], 384
    $region29: #{tpu_custom_call.1} parent=1 // pred_fallthru
      _
    %369 = vsyncpa [#allocation3], 1
    %370 = vsyncpa [#allocation4], 1

</llo_original>
